<compile_context>
chip_gen: v7x
topology: tpu7x:2x2x1
jax: 0.10.0
libtpu: 0.0.40
codegen_flags: <defaults>
</compile_context>

<pallas_src>
import jax
import jax.numpy as jnp
from jax import lax
from jax.experimental import pallas as pl
from jax.experimental.pallas import tpu as pltpu


def _ibasic_block_kernel(x_ref, w1_ref, w2_ref,
                         s1_ref, b1_ref, s2_ref, b2_ref, pw_ref,
                         s3_ref, b3_ref,
                         out_ref, pad_ref):
    """Whole batch per grid step.  x_ref/out_ref: (N, H, W*C) lane-dense."""
    NB, H, WC = x_ref.shape
    M = NB * H

    # Zero only the two H-padding border rows, and only once: the interior is
    # fully overwritten before every use and the scratch persists across grid
    # steps (invariant: interior writes never touch rows 0 and H+1).
    @pl.when(pl.program_id(0) == 0)
    def _init_border():
        zrow = jnp.zeros((NB, 1, WC), pad_ref.dtype)
        pad_ref[:, 0:1, :] = zrow
        pad_ref[:, H + 1:H + 2, :] = zrow

    def conv3x3(w_ref):
        # pad_ref holds the zero-H-padded input slab (f32).  The three kw taps
        # and the W-direction zero padding are already folded into w_ref[kh]
        # (a block-banded (W*C, W*C) bf16 matrix), so each kh tap is one
        # full-width MXU matmul; operands cast to bf16, accumulation in f32.
        def tap(kh):
            lhs = pad_ref[:, kh:kh + H, :].reshape(M, WC).astype(jnp.bfloat16)
            return jnp.dot(lhs, w_ref[kh], preferred_element_type=jnp.float32)
        return tap(0) + tap(1) + tap(2)                   # (M, W*C) float32

    x = x_ref[...]                                        # (NB, H, W*C) f32

    # ---- bn1 (folded per-channel affine, params pre-tiled to lane order) ----
    bn1 = x * s1_ref[...] + b1_ref[...]
    pad_ref[:, 1:H + 1, :] = bn1                          # interior only

    # ---- conv1 ----
    mid = conv3x3(w1_ref)                                 # (M, W*C) f32

    # ---- bn2 + per-channel PReLU (f32 elementwise) ----
    mid = mid * s2_ref[...] + b2_ref[...]
    mid = jnp.where(mid >= 0, mid, mid * pw_ref[...])
    pad_ref[:, 1:H + 1, :] = mid.reshape(NB, H, WC)       # interior only

    # ---- conv2 ----
    out = conv3x3(w2_ref)                                 # (M, W*C) f32

    # ---- bn3 + identity residual ----
    out = out * s3_ref[...] + b3_ref[...] + x.reshape(M, WC)
    out_ref[...] = out.reshape(NB, H, WC).astype(out_ref.dtype)   # dense store


# -------------------------- host-side packing --------------------------------

def _fold_conv_weights(w_hwio, W):
    """(3, 3, Cin, Cout) HWIO weight -> (3, W*Cin, W*Cout) bf16.

    Row kh folds the three kw taps and the W-direction zero padding into one
    block-banded matrix:  block (w_in, w_out) == w[kh, kw]  iff
    w_in == w_out + (kw - 1)  (out-of-range blocks are zero == zero padding).
    """
    folded = []
    for kh in range(3):
        m = None
        for kw in range(3):
            shift = jnp.eye(W, k=-(kw - 1), dtype=jnp.float32)
            blk = jnp.kron(shift, w_hwio[kh, kw].astype(jnp.float32))
            m = blk if m is None else m + blk
        folded.append(m)
    return jnp.stack(folded, axis=0).astype(jnp.bfloat16)


def _tile_chan(v, W):
    """Per-channel (C,) vector -> (1, W*C) matching the lane order w*C + c."""
    return jnp.tile(v.astype(jnp.float32).reshape(-1), W).reshape(1, -1)


def pack_params(params, W):
    """Fold conv weights + tile per-channel affines for the lane-dense kernel."""
    return dict(
        w1=_fold_conv_weights(params["w1"], W),
        w2=_fold_conv_weights(params["w2"], W),
        s1=_tile_chan(params["s1"], W), b1=_tile_chan(params["b1"], W),
        s2=_tile_chan(params["s2"], W), b2=_tile_chan(params["b2"], W),
        pw=_tile_chan(params["pw"], W),
        s3=_tile_chan(params["s3"], W), b3=_tile_chan(params["b3"], W),
    )


def ibasic_block(x_nhwc, packed):
    """x_nhwc: (N, H, W, C) float32 -> (N, H, W, C) float32."""
    N, H, W, C = x_nhwc.shape
    WC = W * C
    assert WC % 128 == 0, "lane-dense layout needs W*C to be a multiple of 128"

    x_dense = x_nhwc.reshape(N, H, WC)        # free layout reshape in XLA

    slab = lambda: pl.BlockSpec((N, H, WC), lambda i: (0, 0, 0))
    wspec = lambda: pl.BlockSpec((3, WC, WC), lambda i: (0, 0, 0))
    chan = lambda: pl.BlockSpec((1, WC), lambda i: (0, 0))

    out_dense = pl.pallas_call(
        _ibasic_block_kernel,
        out_shape=jax.ShapeDtypeStruct((N, H, WC), jnp.float32),
        grid=(1,),                            # whole (tiny) batch in one step
        in_specs=[slab(),                     # x
                  wspec(), wspec(),           # folded conv1 / conv2 weights
                  chan(), chan(),             # bn1 scale / bias (tiled)
                  chan(), chan(),             # bn2 scale / bias (tiled)
                  chan(),                     # prelu weight (tiled)
                  chan(), chan()],            # bn3 scale / bias (tiled)
        out_specs=slab(),
        scratch_shapes=[pltpu.VMEM((N, H + 2, WC), jnp.float32)],
        compiler_params=pltpu.CompilerParams(
            dimension_semantics=("arbitrary",)),
    )(x_dense,
      packed["w1"], packed["w2"],
      packed["s1"], packed["b1"], packed["s2"], packed["b2"], packed["pw"],
      packed["s3"], packed["b3"])

    return out_dense.reshape(N, H, W, C)


# ------------------------------ test harness ---------------------------------

def _fold_bn(gamma, beta, mean, var, eps=1e-5):
    scale = gamma / jnp.sqrt(var + eps)
    bias = beta - mean * scale
    return scale.astype(jnp.float32), bias.astype(jnp.float32)


def _make_params(key, inplanes, planes):
    ks = jax.random.split(key, 15)

    def bn(k0, k1, k2, k3, c):
        gamma = jax.random.uniform(k0, (c,), minval=0.5, maxval=1.5)
        beta = 0.1 * jax.random.normal(k1, (c,))
        mean = 0.1 * jax.random.normal(k2, (c,))
        var = jax.random.uniform(k3, (c,), minval=0.5, maxval=1.5)
        return _fold_bn(gamma, beta, mean, var)

    s1, b1 = bn(ks[0], ks[1], ks[2], ks[3], inplanes)
    s2, b2 = bn(ks[4], ks[5], ks[6], ks[7], planes)
    s3, b3 = bn(ks[8], ks[9], ks[10], ks[11], planes)
    w1 = (jax.random.normal(ks[12], (3, 3, inplanes, planes)) /
          jnp.sqrt(9.0 * inplanes)).astype(jnp.float32)
    w2 = (jax.random.normal(ks[13], (3, 3, planes, planes)) /
          jnp.sqrt(9.0 * planes)).astype(jnp.float32)
    pw = jax.random.uniform(ks[14], (planes,),
                            minval=0.1, maxval=0.4).astype(jnp.float32)
    return dict(w1=w1, w2=w2, s1=s1, b1=b1, s2=s2, b2=b2, pw=pw, s3=s3, b3=b3)


def _reference_nhwc(x, p):
    """Pure-JAX reference (same bf16 conv-operand / f32 accumulation precision)."""
    dn = ("NHWC", "HWIO", "NHWC")
    bn1 = x * p["s1"] + p["b1"]
    c1 = lax.conv_general_dilated(
        bn1.astype(jnp.bfloat16), p["w1"].astype(jnp.bfloat16),
        (1, 1), ((1, 1), (1, 1)), dimension_numbers=dn,
        preferred_element_type=jnp.float32)
    m = c1 * p["s2"] + p["b2"]
    m = jnp.where(m >= 0, m, m * p["pw"])
    c2 = lax.conv_general_dilated(
        m.astype(jnp.bfloat16), p["w2"].astype(jnp.bfloat16),
        (1, 1), ((1, 1), (1, 1)), dimension_numbers=dn,
        preferred_element_type=jnp.float32)
    return c2 * p["s3"] + p["b3"] + x


if __name__ == "__main__":
    key = jax.random.PRNGKey(0)
    kx, kp = jax.random.split(key)

    N, C, H, W = 2, 8, 16, 16            # inplanes = planes = 8, stride = 1
    x_nchw = jax.random.normal(kx, (N, C, H, W), dtype=jnp.float32)
    params = _make_params(kp, C, C)

    # NCHW (PyTorch convention) -> NHWC for the kernel (glue).
    x_nhwc = jnp.transpose(x_nchw, (0, 2, 3, 1))
    packed = pack_params(params, W)

    out_nhwc = ibasic_block(x_nhwc, packed)
    out_nhwc = jax.block_until_ready(out_nhwc)
    out_nchw = jnp.transpose(out_nhwc, (0, 3, 1, 2))     # back to NCHW

    ref = _reference_nhwc(x_nhwc, params)
    # bf16 matmul operands (f32 accumulation) -> small rounding differences vs.
    # a pure-f32 pipeline; the reference uses the same operand precision, so a
    # modest tolerance only absorbs accumulation-order / re-rounding effects.
    if not jnp.allclose(out_nhwc, ref, atol=1e-2, rtol=1e-2):
        err = float(jnp.max(jnp.abs(out_nhwc - ref)))
        raise AssertionError(
            f"Pallas kernel does not match JAX reference (max abs err {err})")
    assert out_nchw.shape == (N, C, H, W)

    print("KERNEL_OK")
</pallas_src>

<mosaic_0001>
module attributes {stable_mosaic.version = 11 : i64} {
  func.func @_ibasic_block_kernel(%arg0: i32, %arg1: memref<2x16x128xf32, #tpu.memory_space<vmem>>, %arg2: memref<3x128x128xbf16, #tpu.memory_space<vmem>>, %arg3: memref<3x128x128xbf16, #tpu.memory_space<vmem>>, %arg4: memref<1x128xf32, #tpu.memory_space<vmem>>, %arg5: memref<1x128xf32, #tpu.memory_space<vmem>>, %arg6: memref<1x128xf32, #tpu.memory_space<vmem>>, %arg7: memref<1x128xf32, #tpu.memory_space<vmem>>, %arg8: memref<1x128xf32, #tpu.memory_space<vmem>>, %arg9: memref<1x128xf32, #tpu.memory_space<vmem>>, %arg10: memref<1x128xf32, #tpu.memory_space<vmem>>, %arg11: memref<2x16x128xf32, #tpu.memory_space<vmem>>, %arg12: memref<2x18x128xf32, #tpu.memory_space<vmem>>) attributes {dimension_semantics = [#tpu.dimension_semantics<arbitrary>], iteration_bounds = array<i64: 1>, scalar_prefetch = 0 : i64, scratch_operands = 1 : i64, tpu.core_type = #tpu.core_type<tc>, window_params = [{pipeline_mode = #tpu.pipeline_mode<synchronous>, transform_indices = @transform_0, window_bounds = array<i64: 2, 16, 128>}, {pipeline_mode = #tpu.pipeline_mode<synchronous>, transform_indices = @transform_1, window_bounds = array<i64: 3, 128, 128>}, {pipeline_mode = #tpu.pipeline_mode<synchronous>, transform_indices = @transform_2, window_bounds = array<i64: 3, 128, 128>}, {pipeline_mode = #tpu.pipeline_mode<synchronous>, transform_indices = @transform_3, window_bounds = array<i64: 1, 128>}, {pipeline_mode = #tpu.pipeline_mode<synchronous>, transform_indices = @transform_4, window_bounds = array<i64: 1, 128>}, {pipeline_mode = #tpu.pipeline_mode<synchronous>, transform_indices = @transform_5, window_bounds = array<i64: 1, 128>}, {pipeline_mode = #tpu.pipeline_mode<synchronous>, transform_indices = @transform_6, window_bounds = array<i64: 1, 128>}, {pipeline_mode = #tpu.pipeline_mode<synchronous>, transform_indices = @transform_7, window_bounds = array<i64: 1, 128>}, {pipeline_mode = #tpu.pipeline_mode<synchronous>, transform_indices = @transform_8, window_bounds = array<i64: 1, 128>}, {pipeline_mode = #tpu.pipeline_mode<synchronous>, transform_indices = @transform_9, window_bounds = array<i64: 1, 128>}, {pipeline_mode = #tpu.pipeline_mode<synchronous>, transform_indices = @transform_10, window_bounds = array<i64: 2, 16, 128>}]} {
    %c0_i32 = arith.constant 0 : i32
    %0 = arith.cmpi eq, %arg0, %c0_i32 : i32
    %1 = arith.extui %0 : i1 to i32
    %c0_i32_0 = arith.constant 0 : i32
    %2 = arith.cmpi ne, %1, %c0_i32_0 : i32
    scf.if %2 {
      %cst_66 = arith.constant 0.000000e+00 : f32
      %77 = vector.broadcast %cst_66 : f32 to vector<2x1x128xf32>
      %c0_67 = arith.constant 0 : index
      %c0_68 = arith.constant 0 : index
      %c0_69 = arith.constant 0 : index
      %78 = vector.load %arg12[%c0_67, %c0_68, %c0_69] : memref<2x18x128xf32, #tpu.memory_space<vmem>>, vector<2x1x128xf32>
      tpu.vector_store %arg12[%c0_67, %c0_68, %c0_69], %77 {strides = array<i32>} : memref<2x18x128xf32, #tpu.memory_space<vmem>>, vector<2x1x128xf32>,
      %c0_70 = arith.constant 0 : index
      %c17 = arith.constant 17 : index
      %c0_71 = arith.constant 0 : index
      %79 = vector.load %arg12[%c0_70, %c17, %c0_71] : memref<2x18x128xf32, #tpu.memory_space<vmem>>, vector<2x1x128xf32>
      tpu.vector_store %arg12[%c0_70, %c17, %c0_71], %77 {strides = array<i32>} : memref<2x18x128xf32, #tpu.memory_space<vmem>>, vector<2x1x128xf32>,
    } else {
    }
    %c0 = arith.constant 0 : index
    %c0_1 = arith.constant 0 : index
    %c0_2 = arith.constant 0 : index
    %3 = vector.load %arg1[%c0, %c0_1, %c0_2] : memref<2x16x128xf32, #tpu.memory_space<vmem>>, vector<2x16x128xf32>
    %c0_3 = arith.constant 0 : index
    %c0_4 = arith.constant 0 : index
    %4 = vector.load %arg4[%c0_3, %c0_4] : memref<1x128xf32, #tpu.memory_space<vmem>>, vector<1x128xf32>
    %5 = vector.shape_cast %4 : vector<1x128xf32> to vector<1x1x128xf32>
    %6 = vector.broadcast %5 : vector<1x1x128xf32> to vector<2x16x128xf32>
    %7 = arith.mulf %3, %6 : vector<2x16x128xf32>
    %c0_5 = arith.constant 0 : index
    %c0_6 = arith.constant 0 : index
    %8 = vector.load %arg5[%c0_5, %c0_6] : memref<1x128xf32, #tpu.memory_space<vmem>>, vector<1x128xf32>
    %9 = vector.shape_cast %8 : vector<1x128xf32> to vector<1x1x128xf32>
    %10 = vector.broadcast %9 : vector<1x1x128xf32> to vector<2x16x128xf32>
    %11 = arith.addf %7, %10 : vector<2x16x128xf32>
    %c0_7 = arith.constant 0 : index
    %c1 = arith.constant 1 : index
    %c0_8 = arith.constant 0 : index
    %12 = vector.load %arg12[%c0_7, %c1, %c0_8] : memref<2x18x128xf32, #tpu.memory_space<vmem>>, vector<2x16x128xf32>
    tpu.vector_store %arg12[%c0_7, %c1, %c0_8], %11 {strides = array<i32>} : memref<2x18x128xf32, #tpu.memory_space<vmem>>, vector<2x16x128xf32>,
    %c0_9 = arith.constant 0 : index
    %c0_10 = arith.constant 0 : index
    %c0_11 = arith.constant 0 : index
    %13 = vector.load %arg12[%c0_9, %c0_10, %c0_11] : memref<2x18x128xf32, #tpu.memory_space<vmem>>, vector<2x16x128xf32>
    %14 = vector.shape_cast %13 : vector<2x16x128xf32> to vector<32x128xf32>
    %15 = arith.truncf %14 : vector<32x128xf32> to vector<32x128xbf16>
    %c0_12 = arith.constant 0 : index
    %c0_13 = arith.constant 0 : index
    %c0_14 = arith.constant 0 : index
    %16 = vector.load %arg2[%c0_12, %c0_13, %c0_14] : memref<3x128x128xbf16, #tpu.memory_space<vmem>>, vector<1x128x128xbf16>
    %17 = vector.shape_cast %16 : vector<1x128x128xbf16> to vector<128x128xbf16>
    %cst = arith.constant dense<0.000000e+00> : vector<32x128xf32>
    %18 = tpu.matmul %15, %17, %cst {dimension_numbers = #tpu.dot_dimension_numbers<[1], [0], [0], [1], [0, 0, 1, 1], [], []>} : vector<32x128xbf16>, vector<128x128xbf16>, vector<32x128xf32> -> vector<32x128xf32>
    %c0_15 = arith.constant 0 : index
    %c1_16 = arith.constant 1 : index
    %c0_17 = arith.constant 0 : index
    %19 = vector.load %arg12[%c0_15, %c1_16, %c0_17] : memref<2x18x128xf32, #tpu.memory_space<vmem>>, vector<2x16x128xf32>
    %20 = vector.shape_cast %19 : vector<2x16x128xf32> to vector<32x128xf32>
    %21 = arith.truncf %20 : vector<32x128xf32> to vector<32x128xbf16>
    %c1_18 = arith.constant 1 : index
    %c0_19 = arith.constant 0 : index
    %c0_20 = arith.constant 0 : index
    %22 = vector.load %arg2[%c1_18, %c0_19, %c0_20] : memref<3x128x128xbf16, #tpu.memory_space<vmem>>, vector<1x128x128xbf16>
    %23 = vector.shape_cast %22 : vector<1x128x128xbf16> to vector<128x128xbf16>
    %cst_21 = arith.constant dense<0.000000e+00> : vector<32x128xf32>
    %24 = tpu.matmul %21, %23, %cst_21 {dimension_numbers = #tpu.dot_dimension_numbers<[1], [0], [0], [1], [0, 0, 1, 1], [], []>} : vector<32x128xbf16>, vector<128x128xbf16>, vector<32x128xf32> -> vector<32x128xf32>
    %25 = arith.addf %18, %24 : vector<32x128xf32>
    %c0_22 = arith.constant 0 : index
    %c2 = arith.constant 2 : index
    %c0_23 = arith.constant 0 : index
    %26 = vector.load %arg12[%c0_22, %c2, %c0_23] : memref<2x18x128xf32, #tpu.memory_space<vmem>>, vector<2x16x128xf32>
    %27 = vector.shape_cast %26 : vector<2x16x128xf32> to vector<32x128xf32>
    %28 = arith.truncf %27 : vector<32x128xf32> to vector<32x128xbf16>
    %c2_24 = arith.constant 2 : index
    %c0_25 = arith.constant 0 : index
    %c0_26 = arith.constant 0 : index
    %29 = vector.load %arg2[%c2_24, %c0_25, %c0_26] : memref<3x128x128xbf16, #tpu.memory_space<vmem>>, vector<1x128x128xbf16>
    %30 = vector.shape_cast %29 : vector<1x128x128xbf16> to vector<128x128xbf16>
    %cst_27 = arith.constant dense<0.000000e+00> : vector<32x128xf32>
    %31 = tpu.matmul %28, %30, %cst_27 {dimension_numbers = #tpu.dot_dimension_numbers<[1], [0], [0], [1], [0, 0, 1, 1], [], []>} : vector<32x128xbf16>, vector<128x128xbf16>, vector<32x128xf32> -> vector<32x128xf32>
    %32 = arith.addf %25, %31 : vector<32x128xf32>
    %c0_28 = arith.constant 0 : index
    %c0_29 = arith.constant 0 : index
    %33 = vector.load %arg6[%c0_28, %c0_29] : memref<1x128xf32, #tpu.memory_space<vmem>>, vector<1x128xf32>
    %34 = vector.broadcast %33 : vector<1x128xf32> to vector<32x128xf32>
    %35 = arith.mulf %32, %34 : vector<32x128xf32>
    %c0_30 = arith.constant 0 : index
    %c0_31 = arith.constant 0 : index
    %36 = vector.load %arg7[%c0_30, %c0_31] : memref<1x128xf32, #tpu.memory_space<vmem>>, vector<1x128xf32>
    %37 = vector.broadcast %36 : vector<1x128xf32> to vector<32x128xf32>
    %38 = arith.addf %35, %37 : vector<32x128xf32>
    %cst_32 = arith.constant 0.000000e+00 : f32
    %39 = vector.broadcast %cst_32 : f32 to vector<32x128xf32>
    %40 = arith.cmpf oge, %38, %39 : vector<32x128xf32>
    %c0_33 = arith.constant 0 : index
    %c0_34 = arith.constant 0 : index
    %41 = vector.load %arg8[%c0_33, %c0_34] : memref<1x128xf32, #tpu.memory_space<vmem>>, vector<1x128xf32>
    %42 = vector.broadcast %41 : vector<1x128xf32> to vector<32x128xf32>
    %43 = arith.mulf %38, %42 : vector<32x128xf32>
    %44 = arith.select %40, %38, %43 : vector<32x128xi1>, vector<32x128xf32>
    %45 = vector.shape_cast %44 : vector<32x128xf32> to vector<2x16x128xf32>
    %c0_35 = arith.constant 0 : index
    %c1_36 = arith.constant 1 : index
    %c0_37 = arith.constant 0 : index
    %46 = vector.load %arg12[%c0_35, %c1_36, %c0_37] : memref<2x18x128xf32, #tpu.memory_space<vmem>>, vector<2x16x128xf32>
    tpu.vector_store %arg12[%c0_35, %c1_36, %c0_37], %45 {strides = array<i32>} : memref<2x18x128xf32, #tpu.memory_space<vmem>>, vector<2x16x128xf32>,
    %c0_38 = arith.constant 0 : index
    %c0_39 = arith.constant 0 : index
    %c0_40 = arith.constant 0 : index
    %47 = vector.load %arg12[%c0_38, %c0_39, %c0_40] : memref<2x18x128xf32, #tpu.memory_space<vmem>>, vector<2x16x128xf32>
    %48 = vector.shape_cast %47 : vector<2x16x128xf32> to vector<32x128xf32>
    %49 = arith.truncf %48 : vector<32x128xf32> to vector<32x128xbf16>
    %c0_41 = arith.constant 0 : index
    %c0_42 = arith.constant 0 : index
    %c0_43 = arith.constant 0 : index
    %50 = vector.load %arg3[%c0_41, %c0_42, %c0_43] : memref<3x128x128xbf16, #tpu.memory_space<vmem>>, vector<1x128x128xbf16>
    %51 = vector.shape_cast %50 : vector<1x128x128xbf16> to vector<128x128xbf16>
    %cst_44 = arith.constant dense<0.000000e+00> : vector<32x128xf32>
    %52 = tpu.matmul %49, %51, %cst_44 {dimension_numbers = #tpu.dot_dimension_numbers<[1], [0], [0], [1], [0, 0, 1, 1], [], []>} : vector<32x128xbf16>, vector<128x128xbf16>, vector<32x128xf32> -> vector<32x128xf32>
    %c0_45 = arith.constant 0 : index
    %c1_46 = arith.constant 1 : index
    %c0_47 = arith.constant 0 : index
    %53 = vector.load %arg12[%c0_45, %c1_46, %c0_47] : memref<2x18x128xf32, #tpu.memory_space<vmem>>, vector<2x16x128xf32>
    %54 = vector.shape_cast %53 : vector<2x16x128xf32> to vector<32x128xf32>
    %55 = arith.truncf %54 : vector<32x128xf32> to vector<32x128xbf16>
    %c1_48 = arith.constant 1 : index
    %c0_49 = arith.constant 0 : index
    %c0_50 = arith.constant 0 : index
    %56 = vector.load %arg3[%c1_48, %c0_49, %c0_50] : memref<3x128x128xbf16, #tpu.memory_space<vmem>>, vector<1x128x128xbf16>
    %57 = vector.shape_cast %56 : vector<1x128x128xbf16> to vector<128x128xbf16>
    %cst_51 = arith.constant dense<0.000000e+00> : vector<32x128xf32>
    %58 = tpu.matmul %55, %57, %cst_51 {dimension_numbers = #tpu.dot_dimension_numbers<[1], [0], [0], [1], [0, 0, 1, 1], [], []>} : vector<32x128xbf16>, vector<128x128xbf16>, vector<32x128xf32> -> vector<32x128xf32>
    %59 = arith.addf %52, %58 : vector<32x128xf32>
    %c0_52 = arith.constant 0 : index
    %c2_53 = arith.constant 2 : index
    %c0_54 = arith.constant 0 : index
    %60 = vector.load %arg12[%c0_52, %c2_53, %c0_54] : memref<2x18x128xf32, #tpu.memory_space<vmem>>, vector<2x16x128xf32>
    %61 = vector.shape_cast %60 : vector<2x16x128xf32> to vector<32x128xf32>
    %62 = arith.truncf %61 : vector<32x128xf32> to vector<32x128xbf16>
    %c2_55 = arith.constant 2 : index
    %c0_56 = arith.constant 0 : index
    %c0_57 = arith.constant 0 : index
    %63 = vector.load %arg3[%c2_55, %c0_56, %c0_57] : memref<3x128x128xbf16, #tpu.memory_space<vmem>>, vector<1x128x128xbf16>
    %64 = vector.shape_cast %63 : vector<1x128x128xbf16> to vector<128x128xbf16>
    %cst_58 = arith.constant dense<0.000000e+00> : vector<32x128xf32>
    %65 = tpu.matmul %62, %64, %cst_58 {dimension_numbers = #tpu.dot_dimension_numbers<[1], [0], [0], [1], [0, 0, 1, 1], [], []>} : vector<32x128xbf16>, vector<128x128xbf16>, vector<32x128xf32> -> vector<32x128xf32>
    %66 = arith.addf %59, %65 : vector<32x128xf32>
    %c0_59 = arith.constant 0 : index
    %c0_60 = arith.constant 0 : index
    %67 = vector.load %arg9[%c0_59, %c0_60] : memref<1x128xf32, #tpu.memory_space<vmem>>, vector<1x128xf32>
    %68 = vector.broadcast %67 : vector<1x128xf32> to vector<32x128xf32>
    %69 = arith.mulf %66, %68 : vector<32x128xf32>
    %c0_61 = arith.constant 0 : index
    %c0_62 = arith.constant 0 : index
    %70 = vector.load %arg10[%c0_61, %c0_62] : memref<1x128xf32, #tpu.memory_space<vmem>>, vector<1x128xf32>
    %71 = vector.broadcast %70 : vector<1x128xf32> to vector<32x128xf32>
    %72 = arith.addf %69, %71 : vector<32x128xf32>
    %73 = vector.shape_cast %3 : vector<2x16x128xf32> to vector<32x128xf32>
    %74 = arith.addf %72, %73 : vector<32x128xf32>
    %75 = vector.shape_cast %74 : vector<32x128xf32> to vector<2x16x128xf32>
    %c0_63 = arith.constant 0 : index
    %c0_64 = arith.constant 0 : index
    %c0_65 = arith.constant 0 : index
    %76 = vector.load %arg11[%c0_63, %c0_64, %c0_65] : memref<2x16x128xf32, #tpu.memory_space<vmem>>, vector<2x16x128xf32>
    tpu.vector_store %arg11[%c0_63, %c0_64, %c0_65], %75 {strides = array<i32>} : memref<2x16x128xf32, #tpu.memory_space<vmem>>, vector<2x16x128xf32>,
    return
  }
  func.func @transform_0(%arg0: i32) -> (i32, i32, i32) {
    %c0_i32 = arith.constant 0 : i32
    %c0_i32_0 = arith.constant 0 : i32
    %c0_i32_1 = arith.constant 0 : i32
    %c0_i32_2 = arith.constant 0 : i32
    return %c0_i32, %c0_i32_0, %c0_i32_1 : i32, i32, i32
  }
  func.func @transform_1(%arg0: i32) -> (i32, i32, i32) {
    %c0_i32 = arith.constant 0 : i32
    %c0_i32_0 = arith.constant 0 : i32
    %c0_i32_1 = arith.constant 0 : i32
    %c0_i32_2 = arith.constant 0 : i32
    return %c0_i32, %c0_i32_0, %c0_i32_1 : i32, i32, i32
  }
  func.func @transform_2(%arg0: i32) -> (i32, i32, i32) {
    %c0_i32 = arith.constant 0 : i32
    %c0_i32_0 = arith.constant 0 : i32
    %c0_i32_1 = arith.constant 0 : i32
    %c0_i32_2 = arith.constant 0 : i32
    return %c0_i32, %c0_i32_0, %c0_i32_1 : i32, i32, i32
  }
  func.func @transform_3(%arg0: i32) -> (i32, i32) {
    %c0_i32 = arith.constant 0 : i32
    %c0_i32_0 = arith.constant 0 : i32
    %c0_i32_1 = arith.constant 0 : i32
    return %c0_i32, %c0_i32_0 : i32, i32
  }
  func.func @transform_4(%arg0: i32) -> (i32, i32) {
    %c0_i32 = arith.constant 0 : i32
    %c0_i32_0 = arith.constant 0 : i32
    %c0_i32_1 = arith.constant 0 : i32
    return %c0_i32, %c0_i32_0 : i32, i32
  }
  func.func @transform_5(%arg0: i32) -> (i32, i32) {
    %c0_i32 = arith.constant 0 : i32
    %c0_i32_0 = arith.constant 0 : i32
    %c0_i32_1 = arith.constant 0 : i32
    return %c0_i32, %c0_i32_0 : i32, i32
  }
  func.func @transform_6(%arg0: i32) -> (i32, i32) {
    %c0_i32 = arith.constant 0 : i32
    %c0_i32_0 = arith.constant 0 : i32
    %c0_i32_1 = arith.constant 0 : i32
    return %c0_i32, %c0_i32_0 : i32, i32
  }
  func.func @transform_7(%arg0: i32) -> (i32, i32) {
    %c0_i32 = arith.constant 0 : i32
    %c0_i32_0 = arith.constant 0 : i32
    %c0_i32_1 = arith.constant 0 : i32
    return %c0_i32, %c0_i32_0 : i32, i32
  }
  func.func @transform_8(%arg0: i32) -> (i32, i32) {
    %c0_i32 = arith.constant 0 : i32
    %c0_i32_0 = arith.constant 0 : i32
    %c0_i32_1 = arith.constant 0 : i32
    return %c0_i32, %c0_i32_0 : i32, i32
  }
  func.func @transform_9(%arg0: i32) -> (i32, i32) {
    %c0_i32 = arith.constant 0 : i32
    %c0_i32_0 = arith.constant 0 : i32
    %c0_i32_1 = arith.constant 0 : i32
    return %c0_i32, %c0_i32_0 : i32, i32
  }
  func.func @transform_10(%arg0: i32) -> (i32, i32, i32) {
    %c0_i32 = arith.constant 0 : i32
    %c0_i32_0 = arith.constant 0 : i32
    %c0_i32_1 = arith.constant 0 : i32
    %c0_i32_2 = arith.constant 0 : i32
    return %c0_i32, %c0_i32_0, %c0_i32_1 : i32, i32, i32
  }
}

</mosaic_0001>

<llo_original>
// kernel: tpu_custom_call.1
$region0: #{tpu_custom_call.1}
  #allocation0 [shape = 'u32[]', space=smem, size = 0x4, offset = 0x4, fixed_abs, tag = 'smem constant byte address 0x4 - core index']
  #allocation1 [shape = 'u32[144,128]{1,0:T(1,128)}', space=vmem, size = 0x12000, scoped, tag = 'internal scratch']
  #allocation2 [shape = 'f32[2,18,128]{2,1,0:T(8,128)}', space=vmem, size = 0x6000, scoped, tag = 'scratch operand']
  %s0 = inlined_call_operand.hbm [shape: f32[2,16,128], index: 0, kind: input, shape index: {}]
  %s1 = inlined_call_operand.hbm [shape: bf16[3,128,128], index: 1, kind: input, shape index: {}]
  %s2 = inlined_call_operand.hbm [shape: bf16[3,128,128], index: 2, kind: input, shape index: {}]
  %s3 = inlined_call_operand.vmem [shape: f32[1,128], index: 3, kind: input, shape index: {}]
  %s4 = inlined_call_operand.vmem [shape: f32[1,128], index: 4, kind: input, shape index: {}]
  %s5 = inlined_call_operand.vmem [shape: f32[1,128], index: 5, kind: input, shape index: {}]
  %s6 = inlined_call_operand.vmem [shape: f32[1,128], index: 6, kind: input, shape index: {}]
  %s7 = inlined_call_operand.vmem [shape: f32[1,128], index: 7, kind: input, shape index: {}]
  %s8 = inlined_call_operand.vmem [shape: f32[1,128], index: 8, kind: input, shape index: {}]
  %s9 = inlined_call_operand.vmem [shape: f32[1,128], index: 9, kind: input, shape index: {}]
  %s10 = inlined_call_operand.hbm [shape: f32[2,16,128], index: 10, kind: output, shape index: {}]
  %s11 = sld [smem:[#allocation0]]
  $region66: #{tpu_custom_call.1} parent=0
    _
  %s13 = ssub.s32 1, %s11
  %s14 = scalar_select 0, %s13, %s11
  $region1: #{tpu_custom_call.1} parent=0
    #allocation3 [shape = 'u8[16384]{0}', space=vmem, size = 0x4000, scoped, tag = 'input window, operand 0, single buffered']
    #allocation4 [shape = 's32[1]{0}', space=sflag, size = 0x4, scoped, tag = 'scoped memory for tpu_custom_call.1']
    #allocation5 [shape = 's32[1]{0}', space=sflag, size = 0x4, scoped, tag = 'scoped memory for tpu_custom_call.1']
    #allocation6 [shape = 'u8[98304]{0}', space=vmem, size = 0x18000, scoped, tag = 'input window, operand 1, single buffered']
    #allocation7 [shape = 's32[1]{0}', space=sflag, size = 0x4, scoped, tag = 'scoped memory for tpu_custom_call.1']
    #allocation8 [shape = 'u8[98304]{0}', space=vmem, size = 0x18000, scoped, tag = 'input window, operand 2, single buffered']
    #allocation9 [shape = 'u8[16384]{0}', space=vmem, size = 0x4000, scoped, tag = 'output window, operand 0, single buffered']
    %15 = vsyncpa [#allocation4], 0
    %16 = vsyncpa [#allocation7], 0
    %17 = vsyncpa [#allocation5], 0
    // Predicated region
    $region2: #{tpu_custom_call.1} parent=1 // pred_check
      _
    $region3: #{tpu_custom_call.1} parent=1 // pred_check_branch
      %19 = sbr.rel (0) target = $region5
    $region4: #{tpu_custom_call.1} parent=1 // pred_region
      %s21 = ssub.s32 512, 512
      %22 = vsyncadd [#allocation4], %s21
      %s23 = sshll.u32 [#allocation3], 4
      %s24 = int_to_ptr.vmem [resolvable:$true] %s23
      %29 = dma.hbm_to_vmem [thread:$0]  %s0, 512, %s24, [#allocation4], 128, 128, 8
    $region5: #{tpu_custom_call.1} parent=1 // pred_fallthru
      _
    // Predicated region
    $region6: #{tpu_custom_call.1} parent=1 // pred_check
      _
    $region7: #{tpu_custom_call.1} parent=1 // pred_check_branch
      %31 = sbr.rel (0) target = $region9
    $region8: #{tpu_custom_call.1} parent=1 // pred_region
      %s33 = ssub.s32 3072, 3072
      %34 = vsyncadd [#allocation7], %s33
      %s35 = sshll.u32 [#allocation6], 4
      %s36 = int_to_ptr.vmem [resolvable:$true] %s35
      %41 = dma.hbm_to_vmem [thread:$0]  %s1, 3072, %s36, [#allocation7], 64, 64, 4
    $region9: #{tpu_custom_call.1} parent=1 // pred_fallthru
      _
    // Predicated region
    $region10: #{tpu_custom_call.1} parent=1 // pred_check
      _
    $region11: #{tpu_custom_call.1} parent=1 // pred_check_branch
      %43 = sbr.rel (0) target = $region13
    $region12: #{tpu_custom_call.1} parent=1 // pred_region
      %s45 = ssub.s32 3072, 3072
      %46 = vsyncadd [#allocation7], %s45
      %s47 = sshll.u32 [#allocation8], 4
      %s48 = int_to_ptr.vmem [resolvable:$true] %s47
      %53 = dma.hbm_to_vmem [thread:$0]  %s2, 3072, %s48, [#allocation7], 64, 64, 4
    $region13: #{tpu_custom_call.1} parent=1 // pred_fallthru
      _
    // Predicated region
    $region14: #{tpu_custom_call.1} parent=1 // pred_check
      _
    $region15: #{tpu_custom_call.1} parent=1 // pred_check_branch
      %55 = sbr.rel (0) target = $region17
    $region16: #{tpu_custom_call.1} parent=1 // pred_region
      _
    $region17: #{tpu_custom_call.1} parent=1 // pred_fallthru
      _
    // Predicated region
    $region18: #{tpu_custom_call.1} parent=1 // pred_check
      _
    $region19: #{tpu_custom_call.1} parent=1 // pred_check_branch
      %57 = sbr.rel (0) target = $region21
    $region20: #{tpu_custom_call.1} parent=1 // pred_region
      _
    $region21: #{tpu_custom_call.1} parent=1 // pred_fallthru
      _
    // Predicated region
    $region22: #{tpu_custom_call.1} parent=1 // pred_check
      _
    $region23: #{tpu_custom_call.1} parent=1 // pred_check_branch
      %59 = sbr.rel (0) target = $region25
    $region24: #{tpu_custom_call.1} parent=1 // pred_region
      _
    $region25: #{tpu_custom_call.1} parent=1 // pred_fallthru
      _
    // Predicated region
    $region26: #{tpu_custom_call.1} parent=1 // pred_check
      _
    $region27: #{tpu_custom_call.1} parent=1 // pred_check_branch
      %61 = sbr.rel (0) target = $region29
    $region28: #{tpu_custom_call.1} parent=1 // pred_region
      _
    $region29: #{tpu_custom_call.1} parent=1 // pred_fallthru
      _
    // Predicated region
    $region30: #{tpu_custom_call.1} parent=1 // pred_check
      _
    $region31: #{tpu_custom_call.1} parent=1 // pred_check_branch
      %63 = sbr.rel (0) target = $region33
    $region32: #{tpu_custom_call.1} parent=1 // pred_region
      _
    $region33: #{tpu_custom_call.1} parent=1 // pred_fallthru
      _
    // Predicated region
    $region34: #{tpu_custom_call.1} parent=1 // pred_check
      _
    $region35: #{tpu_custom_call.1} parent=1 // pred_check_branch
      %65 = sbr.rel (0) target = $region37
    $region36: #{tpu_custom_call.1} parent=1 // pred_region
      _
    $region37: #{tpu_custom_call.1} parent=1 // pred_fallthru
      _
    // Predicated region
    $region38: #{tpu_custom_call.1} parent=1 // pred_check
      _
    $region39: #{tpu_custom_call.1} parent=1 // pred_check_branch
      %67 = sbr.rel (0) target = $region41
    $region40: #{tpu_custom_call.1} parent=1 // pred_region
      _
    $region41: #{tpu_custom_call.1} parent=1 // pred_fallthru
      _
    // Predicated region
    $region42: #{tpu_custom_call.1} parent=1 // pred_check
      _
    $region43: #{tpu_custom_call.1} parent=1 // pred_check_branch
      %69 = sbr.rel (0) target = $region45
    $region44: #{tpu_custom_call.1} parent=1 // pred_region
      %70 = dma.done [#allocation4], 512
    $region45: #{tpu_custom_call.1} parent=1 // pred_fallthru
      _
    // Predicated region
    $region46: #{tpu_custom_call.1} parent=1 // pred_check
      _
    $region47: #{tpu_custom_call.1} parent=1 // pred_check_branch
      %72 = sbr.rel (0) target = $region49
    $region48: #{tpu_custom_call.1} parent=1 // pred_region
      %73 = dma.done [#allocation7], 3072
    $region49: #{tpu_custom_call.1} parent=1 // pred_fallthru
      _
    // Predicated region
    $region50: #{tpu_custom_call.1} parent=1 // pred_check
      _
    $region51: #{tpu_custom_call.1} parent=1 // pred_check_branch
      %75 = sbr.rel (0) target = $region53
    $region52: #{tpu_custom_call.1} parent=1 // pred_region
      %76 = dma.done [#allocation7], 3072
    $region53: #{tpu_custom_call.1} parent=1 // pred_fallthru
      _
    %p78 = scmp.eq.s32.totalorder 0, 0
    // Predicated region
    $region54: #{tpu_custom_call.1} parent=1 // pred_check
      %p79 = pneg %p78
    $region55: #{tpu_custom_call.1} parent=1 // pred_check_branch
      %81 = sbr.rel (%p79) target = $region57
    $region56: #{tpu_custom_call.1} parent=1 // pred_region
      %82 = vst [vmem:[#allocation2] sm:$0x1] 0.0
      %83 = vst [vmem:[#allocation2 + $0x18] sm:$0x1] 0.0
      %84 = vst [vmem:[#allocation2 + $0x11] sm:$0x1] 0.0
      %85 = vst [vmem:[#allocation2 + $0x29] sm:$0x1] 0.0
    $region57: #{tpu_custom_call.1} parent=1 // pred_fallthru
      _
    %v86 = vld [vmem:[#allocation3] sm:$0xff]
    %v87 = vld [vmem:[#allocation3 + $0x8] sm:$0xff]
    %v88 = vld [vmem:[#allocation3 + $0x10] sm:$0xff]
    %v89 = vld [vmem:[#allocation3 + $0x18] sm:$0xff]
    %v90 = vld [vmem:[%s3] sm:$0x1]
    %v92 = vlaneseq
    %v93 = vshrl.u32 %v92, 7
    %v94 = vsub.s32 0, %v93
    %v95 = vrot.slane %v90, %v94
    %v97 = vmul.f32 %v86, %v95
    %v98 = vmul.f32 %v87, %v95
    %v99 = vmul.f32 %v88, %v95
    %v100 = vmul.f32 %v89, %v95
    %v101 = vld [vmem:[%s4] sm:$0x1]
    %v103 = vlaneseq
    %v104 = vshrl.u32 %v103, 7
    %v105 = vsub.s32 0, %v104
    %v106 = vrot.slane %v101, %v105
    %v108 = vadd.f32 %v97, %v106
    %v109 = vadd.f32 %v98, %v106
    %v110 = vadd.f32 %v99, %v106
    %v111 = vadd.f32 %v100, %v106
    %112 = vst [vmem:[#allocation2 + $0x1] sm:$0xff] %v108
    %113 = vst [vmem:[#allocation2 + $0x9] sm:$0xff] %v109
    %114 = vst [vmem:[#allocation2 + $0x19] sm:$0xff] %v110
    %115 = vst [vmem:[#allocation2 + $0x21] sm:$0xff] %v111
    %v116 = vld [vmem:[#allocation2] sm:$0xff]
    %v117 = vld [vmem:[#allocation2 + $0x8] sm:$0xff]
    %v118 = vld [vmem:[#allocation2 + $0x18] sm:$0xff]
    %v119 = vld [vmem:[#allocation2 + $0x20] sm:$0xff]
    %v120 = vpack.c.bf16 %v117, %v116
    %v121 = vpack.c.bf16 %v119, %v118
    %v122 = vld [vmem:[#allocation6] sm:$0xf]
    %v123 = vld [vmem:[#allocation6 + $0x4] sm:$0xf]
    %v124 = vld [vmem:[#allocation6 + $0x8] sm:$0xf]
    %v125 = vld [vmem:[#allocation6 + $0xc] sm:$0xf]
    %v126 = vld [vmem:[#allocation6 + $0x10] sm:$0xf]
    %v127 = vld [vmem:[#allocation6 + $0x14] sm:$0xf]
    %v128 = vld [vmem:[#allocation6 + $0x18] sm:$0xf]
    %v129 = vld [vmem:[#allocation6 + $0x1c] sm:$0xf]
    %v130 = vld [vmem:[#allocation6 + $0x20] sm:$0xf]
    %v131 = vld [vmem:[#allocation6 + $0x24] sm:$0xf]
    %v132 = vld [vmem:[#allocation6 + $0x28] sm:$0xf]
    %v133 = vld [vmem:[#allocation6 + $0x2c] sm:$0xf]
    %v134 = vld [vmem:[#allocation6 + $0x30] sm:$0xf]
    %v135 = vld [vmem:[#allocation6 + $0x34] sm:$0xf]
    %v136 = vld [vmem:[#allocation6 + $0x38] sm:$0xf]
    %v137 = vld [vmem:[#allocation6 + $0x3c] sm:$0xf]
    %v138 = vld [vmem:[#allocation2 + $0x1] sm:$0xff]
    %v139 = vld [vmem:[#allocation2 + $0x9] sm:$0xff]
    %v140 = vld [vmem:[#allocation2 + $0x19] sm:$0xff]
    %v141 = vld [vmem:[#allocation2 + $0x21] sm:$0xff]
    %v142 = vpack.c.bf16 %v139, %v138
    %v143 = vpack.c.bf16 %v141, %v140
    %s144 = scalar_lea.vmem [#allocation6], 64
    %v145 = vld [vmem:[%s144] sm:$0xf]
    %v146 = vld [vmem:[%s144 + $0x4] sm:$0xf]
    %v147 = vld [vmem:[%s144 + $0x8] sm:$0xf]
    %v148 = vld [vmem:[%s144 + $0xc] sm:$0xf]
    %v149 = vld [vmem:[%s144 + $0x10] sm:$0xf]
    %v150 = vld [vmem:[%s144 + $0x14] sm:$0xf]
    %v151 = vld [vmem:[%s144 + $0x18] sm:$0xf]
    %v152 = vld [vmem:[%s144 + $0x1c] sm:$0xf]
    %v153 = vld [vmem:[%s144 + $0x20] sm:$0xf]
    %v154 = vld [vmem:[%s144 + $0x24] sm:$0xf]
    %v155 = vld [vmem:[%s144 + $0x28] sm:$0xf]
    %v156 = vld [vmem:[%s144 + $0x2c] sm:$0xf]
    %v157 = vld [vmem:[%s144 + $0x30] sm:$0xf]
    %v158 = vld [vmem:[%s144 + $0x34] sm:$0xf]
    %v159 = vld [vmem:[%s144 + $0x38] sm:$0xf]
    %v160 = vld [vmem:[%s144 + $0x3c] sm:$0xf]
    %v177 = vunpack.c.l.b16 %v145
    %v178 = vunpack.c.l.b16 %v146
    %v179 = vunpack.c.l.b16 %v147
    %v180 = vunpack.c.l.b16 %v148
    %v181 = vunpack.c.l.b16 %v149
    %v182 = vunpack.c.l.b16 %v150
    %v183 = vunpack.c.l.b16 %v151
    %v184 = vunpack.c.l.b16 %v152
    %v185 = vunpack.c.l.b16 %v153
    %v186 = vunpack.c.l.b16 %v154
    %v187 = vunpack.c.l.b16 %v155
    %v188 = vunpack.c.l.b16 %v156
    %v189 = vunpack.c.l.b16 %v157
    %v190 = vunpack.c.l.b16 %v158
    %v191 = vunpack.c.l.b16 %v159
    %v192 = vunpack.c.l.b16 %v160
    %v193 = vpack.c.b16 %v178, %v177
    %v194 = vpack.c.b16 %v180, %v179
    %v195 = vpack.c.b16 %v182, %v181
    %v196 = vpack.c.b16 %v184, %v183
    %v197 = vpack.c.b16 %v186, %v185
    %v198 = vpack.c.b16 %v188, %v187
    %v199 = vpack.c.b16 %v190, %v189
    %v200 = vpack.c.b16 %v192, %v191
    %209 = vmatprep.subr.bf16.mxu0 0
    %210 = vmatpush1.bf16.msra.mxu0 %v193
    %211 = vmatprep.subr.bf16.mxu0 0
    %212 = vmatpush1.bf16.msra.mxu0 %v194
    %213 = vmatprep.subr.bf16.mxu0 0
    %214 = vmatpush1.bf16.msra.mxu0 %v195
    %215 = vmatprep.subr.bf16.mxu0 0
    %216 = vmatpush1.bf16.msra.mxu0 %v196
    %217 = vmatprep.subr.bf16.mxu0 0
    %218 = vmatpush1.bf16.msra.mxu0 %v197
    %219 = vmatprep.subr.bf16.mxu0 0
    %220 = vmatpush1.bf16.msra.mxu0 %v198
    %221 = vmatprep.subr.bf16.mxu0 0
    %222 = vmatpush1.bf16.msra.mxu0 %v199
    %223 = vmatprep.subr.bf16.mxu0 0
    %224 = vmatpush1.bf16.msra.mxu0 %v200
    %225 = vmatprep.subr.bf16.mxu0 0
    %226 = vmatpush1.bf16.msra.mxu0 0
    %227 = vmatprep.subr.bf16.mxu0 0
    %228 = vmatpush1.bf16.msra.mxu0 0
    %229 = vmatprep.subr.bf16.mxu0 0
    %230 = vmatpush1.bf16.msra.mxu0 0
    %231 = vmatprep.subr.bf16.mxu0 0
    %232 = vmatpush1.bf16.msra.mxu0 0
    %233 = vmatprep.subr.bf16.mxu0 0
    %234 = vmatpush1.bf16.msra.mxu0 0
    %235 = vmatprep.subr.bf16.mxu0 0
    %236 = vmatpush1.bf16.msra.mxu0 0
    %237 = vmatprep.subr.bf16.mxu0 0
    %238 = vmatpush1.bf16.msra.mxu0 0
    %239 = vmatprep.subr.bf16.mxu0 0
    %240 = vmatpush1.bf16.msra.mxu0 0
    %241 = vmatprep.mubr.bf16.mxu0 0
    %242 = vmatmul.mubr.bf16.gmra.mrb[0].mxu0 %v142
    %v243 = vpop.f32.mrb[0].mxu0
    %v244 = vadd.f32 0.0, %v243
    %v245 = vpop.f32.mrb[0].mxu0
    %v246 = vpop.f32.mrb[0].mxu0
    %v247 = vadd.f32 0.0, %v246
    %v248 = vpop.f32.mrb[0].mxu0
    %249 = vmatprep.mubr.bf16.mxu0 0
    %250 = vmatmul.mubr.bf16.gmra.mrb[0].mxu0 %v143
    %v251 = vpop.f32.mrb[0].mxu0
    %v252 = vadd.f32 0.0, %v251
    %v253 = vpop.f32.mrb[0].mxu0
    %v254 = vpop.f32.mrb[0].mxu0
    %v255 = vadd.f32 0.0, %v254
    %v256 = vpop.f32.mrb[0].mxu0
    %257 = vdwg.mxu0
    %v274 = vunpack.c.l.b16 %v122
    %v275 = vunpack.c.l.b16 %v123
    %v276 = vunpack.c.l.b16 %v124
    %v277 = vunpack.c.l.b16 %v125
    %v278 = vunpack.c.l.b16 %v126
    %v279 = vunpack.c.l.b16 %v127
    %v280 = vunpack.c.l.b16 %v128
    %v281 = vunpack.c.l.b16 %v129
    %v282 = vunpack.c.l.b16 %v130
    %v283 = vunpack.c.l.b16 %v131
    %v284 = vunpack.c.l.b16 %v132
    %v285 = vunpack.c.l.b16 %v133
    %v286 = vunpack.c.l.b16 %v134
    %v287 = vunpack.c.l.b16 %v135
    %v288 = vunpack.c.l.b16 %v136
    %v289 = vunpack.c.l.b16 %v137
    %v290 = vpack.c.b16 %v275, %v274
    %v291 = vpack.c.b16 %v277, %v276
    %v292 = vpack.c.b16 %v279, %v278
    %v293 = vpack.c.b16 %v281, %v280
    %v294 = vpack.c.b16 %v283, %v282
    %v295 = vpack.c.b16 %v285, %v284
    %v296 = vpack.c.b16 %v287, %v286
    %v297 = vpack.c.b16 %v289, %v288
    %306 = vmatprep.subr.bf16.mxu0 0
    %307 = vmatpush1.bf16.msra.mxu0 %v290
    %308 = vmatprep.subr.bf16.mxu0 0
    %309 = vmatpush1.bf16.msra.mxu0 %v291
    %310 = vmatprep.subr.bf16.mxu0 0
    %311 = vmatpush1.bf16.msra.mxu0 %v292
    %312 = vmatprep.subr.bf16.mxu0 0
    %313 = vmatpush1.bf16.msra.mxu0 %v293
    %314 = vmatprep.subr.bf16.mxu0 0
    %315 = vmatpush1.bf16.msra.mxu0 %v294
    %316 = vmatprep.subr.bf16.mxu0 0
    %317 = vmatpush1.bf16.msra.mxu0 %v295
    %318 = vmatprep.subr.bf16.mxu0 0
    %319 = vmatpush1.bf16.msra.mxu0 %v296
    %320 = vmatprep.subr.bf16.mxu0 0
    %321 = vmatpush1.bf16.msra.mxu0 %v297
    %322 = vmatprep.subr.bf16.mxu0 0
    %323 = vmatpush1.bf16.msra.mxu0 0
    %324 = vmatprep.subr.bf16.mxu0 0
    %325 = vmatpush1.bf16.msra.mxu0 0
    %326 = vmatprep.subr.bf16.mxu0 0
    %327 = vmatpush1.bf16.msra.mxu0 0
    %328 = vmatprep.subr.bf16.mxu0 0
    %329 = vmatpush1.bf16.msra.mxu0 0
    %330 = vmatprep.subr.bf16.mxu0 0
    %331 = vmatpush1.bf16.msra.mxu0 0
    %332 = vmatprep.subr.bf16.mxu0 0
    %333 = vmatpush1.bf16.msra.mxu0 0
    %334 = vmatprep.subr.bf16.mxu0 0
    %335 = vmatpush1.bf16.msra.mxu0 0
    %336 = vmatprep.subr.bf16.mxu0 0
    %337 = vmatpush1.bf16.msra.mxu0 0
    %338 = vmatprep.mubr.bf16.mxu0 0
    %339 = vmatmul.mubr.bf16.gmra.mrb[0].mxu0 %v120
    %v340 = vpop.f32.mrb[0].mxu0
    %v341 = vadd.f32 %v244, %v340
    %v342 = vpop.f32.mrb[0].mxu0
    %v343 = vpop.f32.mrb[0].mxu0
    %v344 = vadd.f32 %v247, %v343
    %v345 = vpop.f32.mrb[0].mxu0
    %346 = vmatprep.mubr.bf16.mxu0 0
    %347 = vmatmul.mubr.bf16.gmra.mrb[0].mxu0 %v121
    %v348 = vpop.f32.mrb[0].mxu0
    %v349 = vadd.f32 %v252, %v348
    %v350 = vpop.f32.mrb[0].mxu0
    %v351 = vpop.f32.mrb[0].mxu0
    %v352 = vadd.f32 %v255, %v351
    %v353 = vpop.f32.mrb[0].mxu0
    %354 = vdwg.mxu0
    %v355 = vld [vmem:[#allocation2 + $0x2] sm:$0xff]
    %v356 = vld [vmem:[#allocation2 + $0xa] sm:$0xff]
    %v357 = vld [vmem:[#allocation2 + $0x1a] sm:$0xff]
    %v358 = vld [vmem:[#allocation2 + $0x22] sm:$0xff]
    %v359 = vpack.c.bf16 %v356, %v355
    %v360 = vpack.c.bf16 %v358, %v357
    %s361 = scalar_lea.vmem [#allocation6], 128
    %v362 = vld [vmem:[%s361] sm:$0xf]
    %v363 = vld [vmem:[%s361 + $0x4] sm:$0xf]
    %v364 = vld [vmem:[%s361 + $0x8] sm:$0xf]
    %v365 = vld [vmem:[%s361 + $0xc] sm:$0xf]
    %v366 = vld [vmem:[%s361 + $0x10] sm:$0xf]
    %v367 = vld [vmem:[%s361 + $0x14] sm:$0xf]
    %v368 = vld [vmem:[%s361 + $0x18] sm:$0xf]
    %v369 = vld [vmem:[%s361 + $0x1c] sm:$0xf]
    %v370 = vld [vmem:[%s361 + $0x20] sm:$0xf]
    %v371 = vld [vmem:[%s361 + $0x24] sm:$0xf]
    %v372 = vld [vmem:[%s361 + $0x28] sm:$0xf]
    %v373 = vld [vmem:[%s361 + $0x2c] sm:$0xf]
    %v374 = vld [vmem:[%s361 + $0x30] sm:$0xf]
    %v375 = vld [vmem:[%s361 + $0x34] sm:$0xf]
    %v376 = vld [vmem:[%s361 + $0x38] sm:$0xf]
    %v377 = vld [vmem:[%s361 + $0x3c] sm:$0xf]
    %v394 = vunpack.c.l.b16 %v362
    %v395 = vunpack.c.l.b16 %v363
    %v396 = vunpack.c.l.b16 %v364
    %v397 = vunpack.c.l.b16 %v365
    %v398 = vunpack.c.l.b16 %v366
    %v399 = vunpack.c.l.b16 %v367
    %v400 = vunpack.c.l.b16 %v368
    %v401 = vunpack.c.l.b16 %v369
    %v402 = vunpack.c.l.b16 %v370
    %v403 = vunpack.c.l.b16 %v371
    %v404 = vunpack.c.l.b16 %v372
    %v405 = vunpack.c.l.b16 %v373
    %v406 = vunpack.c.l.b16 %v374
    %v407 = vunpack.c.l.b16 %v375
    %v408 = vunpack.c.l.b16 %v376
    %v409 = vunpack.c.l.b16 %v377
    %v410 = vpack.c.b16 %v395, %v394
    %v411 = vpack.c.b16 %v397, %v396
    %v412 = vpack.c.b16 %v399, %v398
    %v413 = vpack.c.b16 %v401, %v400
    %v414 = vpack.c.b16 %v403, %v402
    %v415 = vpack.c.b16 %v405, %v404
    %v416 = vpack.c.b16 %v407, %v406
    %v417 = vpack.c.b16 %v409, %v408
    %426 = vmatprep.subr.bf16.mxu0 0
    %427 = vmatpush1.bf16.msra.mxu0 %v410
    %428 = vmatprep.subr.bf16.mxu0 0
    %429 = vmatpush1.bf16.msra.mxu0 %v411
    %430 = vmatprep.subr.bf16.mxu0 0
    %431 = vmatpush1.bf16.msra.mxu0 %v412
    %432 = vmatprep.subr.bf16.mxu0 0
    %433 = vmatpush1.bf16.msra.mxu0 %v413
    %434 = vmatprep.subr.bf16.mxu0 0
    %435 = vmatpush1.bf16.msra.mxu0 %v414
    %436 = vmatprep.subr.bf16.mxu0 0
    %437 = vmatpush1.bf16.msra.mxu0 %v415
    %438 = vmatprep.subr.bf16.mxu0 0
    %439 = vmatpush1.bf16.msra.mxu0 %v416
    %440 = vmatprep.subr.bf16.mxu0 0
    %441 = vmatpush1.bf16.msra.mxu0 %v417
    %442 = vmatprep.subr.bf16.mxu0 0
    %443 = vmatpush1.bf16.msra.mxu0 0
    %444 = vmatprep.subr.bf16.mxu0 0
    %445 = vmatpush1.bf16.msra.mxu0 0
    %446 = vmatprep.subr.bf16.mxu0 0
    %447 = vmatpush1.bf16.msra.mxu0 0
    %448 = vmatprep.subr.bf16.mxu0 0
    %449 = vmatpush1.bf16.msra.mxu0 0
    %450 = vmatprep.subr.bf16.mxu0 0
    %451 = vmatpush1.bf16.msra.mxu0 0
    %452 = vmatprep.subr.bf16.mxu0 0
    %453 = vmatpush1.bf16.msra.mxu0 0
    %454 = vmatprep.subr.bf16.mxu0 0
    %455 = vmatpush1.bf16.msra.mxu0 0
    %456 = vmatprep.subr.bf16.mxu0 0
    %457 = vmatpush1.bf16.msra.mxu0 0
    %458 = vmatprep.mubr.bf16.mxu0 0
    %459 = vmatmul.mubr.bf16.gmra.mrb[0].mxu0 %v359
    %v460 = vpop.f32.mrb[0].mxu0
    %v461 = vadd.f32 0.0, %v460
    %v462 = vpop.f32.mrb[0].mxu0
    %v463 = vpop.f32.mrb[0].mxu0
    %v464 = vadd.f32 0.0, %v463
    %v465 = vpop.f32.mrb[0].mxu0
    %466 = vmatprep.mubr.bf16.mxu0 0
    %467 = vmatmul.mubr.bf16.gmra.mrb[0].mxu0 %v360
    %v468 = vpop.f32.mrb[0].mxu0
    %v469 = vadd.f32 0.0, %v468
    %v470 = vpop.f32.mrb[0].mxu0
    %v471 = vpop.f32.mrb[0].mxu0
    %v472 = vadd.f32 0.0, %v471
    %v473 = vpop.f32.mrb[0].mxu0
    %474 = vdwg.mxu0
    %v475 = vadd.f32 %v341, %v461
    %v476 = vadd.f32 %v344, %v464
    %v477 = vadd.f32 %v349, %v469
    %v478 = vadd.f32 %v352, %v472
    %v479 = vld [vmem:[%s5] sm:$0x1]
    %v481 = vlaneseq
    %v482 = vshrl.u32 %v481, 7
    %v483 = vsub.s32 0, %v482
    %v484 = vrot.slane %v479, %v483
    %v486 = vmul.f32 %v475, %v484
    %v487 = vmul.f32 %v476, %v484
    %v488 = vmul.f32 %v477, %v484
    %v489 = vmul.f32 %v478, %v484
    %v490 = vld [vmem:[%s6] sm:$0x1]
    %v492 = vlaneseq
    %v493 = vshrl.u32 %v492, 7
    %v494 = vsub.s32 0, %v493
    %v495 = vrot.slane %v490, %v494
    %v497 = vadd.f32 %v486, %v495
    %v498 = vadd.f32 %v487, %v495
    %v499 = vadd.f32 %v488, %v495
    %v500 = vadd.f32 %v489, %v495
    %vm501 = vcmp.ge.f32.partialorder %v497, 0.0
    %vm502 = vcmp.ge.f32.partialorder %v498, 0.0
    %vm503 = vcmp.ge.f32.partialorder %v499, 0.0
    %vm504 = vcmp.ge.f32.partialorder %v500, 0.0
    %v505 = vld [vmem:[%s7] sm:$0x1]
    %v507 = vlaneseq
    %v508 = vshrl.u32 %v507, 7
    %v509 = vsub.s32 0, %v508
    %v510 = vrot.slane %v505, %v509
    %v512 = vmul.f32 %v497, %v510
    %v513 = vmul.f32 %v498, %v510
    %v514 = vmul.f32 %v499, %v510
    %v515 = vmul.f32 %v500, %v510
    %v516 = vsel %vm501, %v497, %v512
    %v517 = vsel %vm502, %v498, %v513
    %v518 = vsel %vm503, %v499, %v514
    %v519 = vsel %vm504, %v500, %v515
    %520 = vst [vmem:[#allocation2 + $0x1] sm:$0xff] %v516
    %521 = vst [vmem:[#allocation2 + $0x9] sm:$0xff] %v517
    %522 = vst [vmem:[#allocation2 + $0x19] sm:$0xff] %v518
    %523 = vst [vmem:[#allocation2 + $0x21] sm:$0xff] %v519
    %v524 = vld [vmem:[#allocation2] sm:$0xff]
    %v525 = vld [vmem:[#allocation2 + $0x8] sm:$0xff]
    %v526 = vld [vmem:[#allocation2 + $0x18] sm:$0xff]
    %v527 = vld [vmem:[#allocation2 + $0x20] sm:$0xff]
    %v528 = vpack.c.bf16 %v525, %v524
    %v529 = vpack.c.bf16 %v527, %v526
    %v530 = vld [vmem:[#allocation8] sm:$0xf]
    %v531 = vld [vmem:[#allocation8 + $0x4] sm:$0xf]
    %v532 = vld [vmem:[#allocation8 + $0x8] sm:$0xf]
    %v533 = vld [vmem:[#allocation8 + $0xc] sm:$0xf]
    %v534 = vld [vmem:[#allocation8 + $0x10] sm:$0xf]
    %v535 = vld [vmem:[#allocation8 + $0x14] sm:$0xf]
    %v536 = vld [vmem:[#allocation8 + $0x18] sm:$0xf]
    %v537 = vld [vmem:[#allocation8 + $0x1c] sm:$0xf]
    %v538 = vld [vmem:[#allocation8 + $0x20] sm:$0xf]
    %v539 = vld [vmem:[#allocation8 + $0x24] sm:$0xf]
    %v540 = vld [vmem:[#allocation8 + $0x28] sm:$0xf]
    %v541 = vld [vmem:[#allocation8 + $0x2c] sm:$0xf]
    %v542 = vld [vmem:[#allocation8 + $0x30] sm:$0xf]
    %v543 = vld [vmem:[#allocation8 + $0x34] sm:$0xf]
    %v544 = vld [vmem:[#allocation8 + $0x38] sm:$0xf]
    %v545 = vld [vmem:[#allocation8 + $0x3c] sm:$0xf]
    %v546 = vld [vmem:[#allocation2 + $0x1] sm:$0xff]
    %v547 = vld [vmem:[#allocation2 + $0x9] sm:$0xff]
    %v548 = vld [vmem:[#allocation2 + $0x19] sm:$0xff]
    %v549 = vld [vmem:[#allocation2 + $0x21] sm:$0xff]
    %v550 = vpack.c.bf16 %v547, %v546
    %v551 = vpack.c.bf16 %v549, %v548
    %s552 = scalar_lea.vmem [#allocation8], 64
    %v553 = vld [vmem:[%s552] sm:$0xf]
    %v554 = vld [vmem:[%s552 + $0x4] sm:$0xf]
    %v555 = vld [vmem:[%s552 + $0x8] sm:$0xf]
    %v556 = vld [vmem:[%s552 + $0xc] sm:$0xf]
    %v557 = vld [vmem:[%s552 + $0x10] sm:$0xf]
    %v558 = vld [vmem:[%s552 + $0x14] sm:$0xf]
    %v559 = vld [vmem:[%s552 + $0x18] sm:$0xf]
    %v560 = vld [vmem:[%s552 + $0x1c] sm:$0xf]
    %v561 = vld [vmem:[%s552 + $0x20] sm:$0xf]
    %v562 = vld [vmem:[%s552 + $0x24] sm:$0xf]
    %v563 = vld [vmem:[%s552 + $0x28] sm:$0xf]
    %v564 = vld [vmem:[%s552 + $0x2c] sm:$0xf]
    %v565 = vld [vmem:[%s552 + $0x30] sm:$0xf]
    %v566 = vld [vmem:[%s552 + $0x34] sm:$0xf]
    %v567 = vld [vmem:[%s552 + $0x38] sm:$0xf]
    %v568 = vld [vmem:[%s552 + $0x3c] sm:$0xf]
    %v585 = vunpack.c.l.b16 %v553
    %v586 = vunpack.c.l.b16 %v554
    %v587 = vunpack.c.l.b16 %v555
    %v588 = vunpack.c.l.b16 %v556
    %v589 = vunpack.c.l.b16 %v557
    %v590 = vunpack.c.l.b16 %v558
    %v591 = vunpack.c.l.b16 %v559
    %v592 = vunpack.c.l.b16 %v560
    %v593 = vunpack.c.l.b16 %v561
    %v594 = vunpack.c.l.b16 %v562
    %v595 = vunpack.c.l.b16 %v563
    %v596 = vunpack.c.l.b16 %v564
    %v597 = vunpack.c.l.b16 %v565
    %v598 = vunpack.c.l.b16 %v566
    %v599 = vunpack.c.l.b16 %v567
    %v600 = vunpack.c.l.b16 %v568
    %v601 = vpack.c.b16 %v586, %v585
    %v602 = vpack.c.b16 %v588, %v587
    %v603 = vpack.c.b16 %v590, %v589
    %v604 = vpack.c.b16 %v592, %v591
    %v605 = vpack.c.b16 %v594, %v593
    %v606 = vpack.c.b16 %v596, %v595
    %v607 = vpack.c.b16 %v598, %v597
    %v608 = vpack.c.b16 %v600, %v599
    %617 = vmatprep.subr.bf16.mxu0 0
    %618 = vmatpush1.bf16.msra.mxu0 %v601
    %619 = vmatprep.subr.bf16.mxu0 0
    %620 = vmatpush1.bf16.msra.mxu0 %v602
    %621 = vmatprep.subr.bf16.mxu0 0
    %622 = vmatpush1.bf16.msra.mxu0 %v603
    %623 = vmatprep.subr.bf16.mxu0 0
    %624 = vmatpush1.bf16.msra.mxu0 %v604
    %625 = vmatprep.subr.bf16.mxu0 0
    %626 = vmatpush1.bf16.msra.mxu0 %v605
    %627 = vmatprep.subr.bf16.mxu0 0
    %628 = vmatpush1.bf16.msra.mxu0 %v606
    %629 = vmatprep.subr.bf16.mxu0 0
    %630 = vmatpush1.bf16.msra.mxu0 %v607
    %631 = vmatprep.subr.bf16.mxu0 0
    %632 = vmatpush1.bf16.msra.mxu0 %v608
    %633 = vmatprep.subr.bf16.mxu0 0
    %634 = vmatpush1.bf16.msra.mxu0 0
    %635 = vmatprep.subr.bf16.mxu0 0
    %636 = vmatpush1.bf16.msra.mxu0 0
    %637 = vmatprep.subr.bf16.mxu0 0
    %638 = vmatpush1.bf16.msra.mxu0 0
    %639 = vmatprep.subr.bf16.mxu0 0
    %640 = vmatpush1.bf16.msra.mxu0 0
    %641 = vmatprep.subr.bf16.mxu0 0
    %642 = vmatpush1.bf16.msra.mxu0 0
    %643 = vmatprep.subr.bf16.mxu0 0
    %644 = vmatpush1.bf16.msra.mxu0 0
    %645 = vmatprep.subr.bf16.mxu0 0
    %646 = vmatpush1.bf16.msra.mxu0 0
    %647 = vmatprep.subr.bf16.mxu0 0
    %648 = vmatpush1.bf16.msra.mxu0 0
    %649 = vmatprep.mubr.bf16.mxu0 0
    %650 = vmatmul.mubr.bf16.gmra.mrb[0].mxu0 %v550
    %v651 = vpop.f32.mrb[0].mxu0
    %v652 = vadd.f32 0.0, %v651
    %v653 = vpop.f32.mrb[0].mxu0
    %v654 = vpop.f32.mrb[0].mxu0
    %v655 = vadd.f32 0.0, %v654
    %v656 = vpop.f32.mrb[0].mxu0
    %657 = vmatprep.mubr.bf16.mxu0 0
    %658 = vmatmul.mubr.bf16.gmra.mrb[0].mxu0 %v551
    %v659 = vpop.f32.mrb[0].mxu0
    %v660 = vadd.f32 0.0, %v659
    %v661 = vpop.f32.mrb[0].mxu0
    %v662 = vpop.f32.mrb[0].mxu0
    %v663 = vadd.f32 0.0, %v662
    %v664 = vpop.f32.mrb[0].mxu0
    %665 = vdwg.mxu0
    %v682 = vunpack.c.l.b16 %v530
    %v683 = vunpack.c.l.b16 %v531
    %v684 = vunpack.c.l.b16 %v532
    %v685 = vunpack.c.l.b16 %v533
    %v686 = vunpack.c.l.b16 %v534
    %v687 = vunpack.c.l.b16 %v535
    %v688 = vunpack.c.l.b16 %v536
    %v689 = vunpack.c.l.b16 %v537
    %v690 = vunpack.c.l.b16 %v538
    %v691 = vunpack.c.l.b16 %v539
    %v692 = vunpack.c.l.b16 %v540
    %v693 = vunpack.c.l.b16 %v541
    %v694 = vunpack.c.l.b16 %v542
    %v695 = vunpack.c.l.b16 %v543
    %v696 = vunpack.c.l.b16 %v544
    %v697 = vunpack.c.l.b16 %v545
    %v698 = vpack.c.b16 %v683, %v682
    %v699 = vpack.c.b16 %v685, %v684
    %v700 = vpack.c.b16 %v687, %v686
    %v701 = vpack.c.b16 %v689, %v688
    %v702 = vpack.c.b16 %v691, %v690
    %v703 = vpack.c.b16 %v693, %v692
    %v704 = vpack.c.b16 %v695, %v694
    %v705 = vpack.c.b16 %v697, %v696
    %714 = vmatprep.subr.bf16.mxu0 0
    %715 = vmatpush1.bf16.msra.mxu0 %v698
    %716 = vmatprep.subr.bf16.mxu0 0
    %717 = vmatpush1.bf16.msra.mxu0 %v699
    %718 = vmatprep.subr.bf16.mxu0 0
    %719 = vmatpush1.bf16.msra.mxu0 %v700
    %720 = vmatprep.subr.bf16.mxu0 0
    %721 = vmatpush1.bf16.msra.mxu0 %v701
    %722 = vmatprep.subr.bf16.mxu0 0
    %723 = vmatpush1.bf16.msra.mxu0 %v702
    %724 = vmatprep.subr.bf16.mxu0 0
    %725 = vmatpush1.bf16.msra.mxu0 %v703
    %726 = vmatprep.subr.bf16.mxu0 0
    %727 = vmatpush1.bf16.msra.mxu0 %v704
    %728 = vmatprep.subr.bf16.mxu0 0
    %729 = vmatpush1.bf16.msra.mxu0 %v705
    %730 = vmatprep.subr.bf16.mxu0 0
    %731 = vmatpush1.bf16.msra.mxu0 0
    %732 = vmatprep.subr.bf16.mxu0 0
    %733 = vmatpush1.bf16.msra.mxu0 0
    %734 = vmatprep.subr.bf16.mxu0 0
    %735 = vmatpush1.bf16.msra.mxu0 0
    %736 = vmatprep.subr.bf16.mxu0 0
    %737 = vmatpush1.bf16.msra.mxu0 0
    %738 = vmatprep.subr.bf16.mxu0 0
    %739 = vmatpush1.bf16.msra.mxu0 0
    %740 = vmatprep.subr.bf16.mxu0 0
    %741 = vmatpush1.bf16.msra.mxu0 0
    %742 = vmatprep.subr.bf16.mxu0 0
    %743 = vmatpush1.bf16.msra.mxu0 0
    %744 = vmatprep.subr.bf16.mxu0 0
    %745 = vmatpush1.bf16.msra.mxu0 0
    %746 = vmatprep.mubr.bf16.mxu0 0
    %747 = vmatmul.mubr.bf16.gmra.mrb[0].mxu0 %v528
    %v748 = vpop.f32.mrb[0].mxu0
    %v749 = vadd.f32 %v652, %v748
    %v750 = vpop.f32.mrb[0].mxu0
    %v751 = vpop.f32.mrb[0].mxu0
    %v752 = vadd.f32 %v655, %v751
    %v753 = vpop.f32.mrb[0].mxu0
    %754 = vmatprep.mubr.bf16.mxu0 0
    %755 = vmatmul.mubr.bf16.gmra.mrb[0].mxu0 %v529
    %v756 = vpop.f32.mrb[0].mxu0
    %v757 = vadd.f32 %v660, %v756
    %v758 = vpop.f32.mrb[0].mxu0
    %v759 = vpop.f32.mrb[0].mxu0
    %v760 = vadd.f32 %v663, %v759
    %v761 = vpop.f32.mrb[0].mxu0
    %762 = vdwg.mxu0
    %v763 = vld [vmem:[#allocation2 + $0x2] sm:$0xff]
    %v764 = vld [vmem:[#allocation2 + $0xa] sm:$0xff]
    %v765 = vld [vmem:[#allocation2 + $0x1a] sm:$0xff]
    %v766 = vld [vmem:[#allocation2 + $0x22] sm:$0xff]
    %v767 = vpack.c.bf16 %v764, %v763
    %v768 = vpack.c.bf16 %v766, %v765
    %s769 = scalar_lea.vmem [#allocation8], 128
    %v770 = vld [vmem:[%s769] sm:$0xf]
    %v771 = vld [vmem:[%s769 + $0x4] sm:$0xf]
    %v772 = vld [vmem:[%s769 + $0x8] sm:$0xf]
    %v773 = vld [vmem:[%s769 + $0xc] sm:$0xf]
    %v774 = vld [vmem:[%s769 + $0x10] sm:$0xf]
    %v775 = vld [vmem:[%s769 + $0x14] sm:$0xf]
    %v776 = vld [vmem:[%s769 + $0x18] sm:$0xf]
    %v777 = vld [vmem:[%s769 + $0x1c] sm:$0xf]
    %v778 = vld [vmem:[%s769 + $0x20] sm:$0xf]
    %v779 = vld [vmem:[%s769 + $0x24] sm:$0xf]
    %v780 = vld [vmem:[%s769 + $0x28] sm:$0xf]
    %v781 = vld [vmem:[%s769 + $0x2c] sm:$0xf]
    %v782 = vld [vmem:[%s769 + $0x30] sm:$0xf]
    %v783 = vld [vmem:[%s769 + $0x34] sm:$0xf]
    %v784 = vld [vmem:[%s769 + $0x38] sm:$0xf]
    %v785 = vld [vmem:[%s769 + $0x3c] sm:$0xf]
    %v802 = vunpack.c.l.b16 %v770
    %v803 = vunpack.c.l.b16 %v771
    %v804 = vunpack.c.l.b16 %v772
    %v805 = vunpack.c.l.b16 %v773
    %v806 = vunpack.c.l.b16 %v774
    %v807 = vunpack.c.l.b16 %v775
    %v808 = vunpack.c.l.b16 %v776
    %v809 = vunpack.c.l.b16 %v777
    %v810 = vunpack.c.l.b16 %v778
    %v811 = vunpack.c.l.b16 %v779
    %v812 = vunpack.c.l.b16 %v780
    %v813 = vunpack.c.l.b16 %v781
    %v814 = vunpack.c.l.b16 %v782
    %v815 = vunpack.c.l.b16 %v783
    %v816 = vunpack.c.l.b16 %v784
    %v817 = vunpack.c.l.b16 %v785
    %v818 = vpack.c.b16 %v803, %v802
    %v819 = vpack.c.b16 %v805, %v804
    %v820 = vpack.c.b16 %v807, %v806
    %v821 = vpack.c.b16 %v809, %v808
    %v822 = vpack.c.b16 %v811, %v810
    %v823 = vpack.c.b16 %v813, %v812
    %v824 = vpack.c.b16 %v815, %v814
    %v825 = vpack.c.b16 %v817, %v816
    %834 = vmatprep.subr.bf16.mxu0 0
    %835 = vmatpush1.bf16.msra.mxu0 %v818
    %836 = vmatprep.subr.bf16.mxu0 0
    %837 = vmatpush1.bf16.msra.mxu0 %v819
    %838 = vmatprep.subr.bf16.mxu0 0
    %839 = vmatpush1.bf16.msra.mxu0 %v820
    %840 = vmatprep.subr.bf16.mxu0 0
    %841 = vmatpush1.bf16.msra.mxu0 %v821
    %842 = vmatprep.subr.bf16.mxu0 0
    %843 = vmatpush1.bf16.msra.mxu0 %v822
    %844 = vmatprep.subr.bf16.mxu0 0
    %845 = vmatpush1.bf16.msra.mxu0 %v823
    %846 = vmatprep.subr.bf16.mxu0 0
    %847 = vmatpush1.bf16.msra.mxu0 %v824
    %848 = vmatprep.subr.bf16.mxu0 0
    %849 = vmatpush1.bf16.msra.mxu0 %v825
    %850 = vmatprep.subr.bf16.mxu0 0
    %851 = vmatpush1.bf16.msra.mxu0 0
    %852 = vmatprep.subr.bf16.mxu0 0
    %853 = vmatpush1.bf16.msra.mxu0 0
    %854 = vmatprep.subr.bf16.mxu0 0
    %855 = vmatpush1.bf16.msra.mxu0 0
    %856 = vmatprep.subr.bf16.mxu0 0
    %857 = vmatpush1.bf16.msra.mxu0 0
    %858 = vmatprep.subr.bf16.mxu0 0
    %859 = vmatpush1.bf16.msra.mxu0 0
    %860 = vmatprep.subr.bf16.mxu0 0
    %861 = vmatpush1.bf16.msra.mxu0 0
    %862 = vmatprep.subr.bf16.mxu0 0
    %863 = vmatpush1.bf16.msra.mxu0 0
    %864 = vmatprep.subr.bf16.mxu0 0
    %865 = vmatpush1.bf16.msra.mxu0 0
    %866 = vmatprep.mubr.bf16.mxu0 0
    %867 = vmatmul.mubr.bf16.gmra.mrb[0].mxu0 %v767
    %v868 = vpop.f32.mrb[0].mxu0
    %v869 = vadd.f32 0.0, %v868
    %v870 = vpop.f32.mrb[0].mxu0
    %v871 = vpop.f32.mrb[0].mxu0
    %v872 = vadd.f32 0.0, %v871
    %v873 = vpop.f32.mrb[0].mxu0
    %874 = vmatprep.mubr.bf16.mxu0 0
    %875 = vmatmul.mubr.bf16.gmra.mrb[0].mxu0 %v768
    %v876 = vpop.f32.mrb[0].mxu0
    %v877 = vadd.f32 0.0, %v876
    %v878 = vpop.f32.mrb[0].mxu0
    %v879 = vpop.f32.mrb[0].mxu0
    %v880 = vadd.f32 0.0, %v879
    %v881 = vpop.f32.mrb[0].mxu0
    %882 = vdwg.mxu0
    %v883 = vadd.f32 %v749, %v869
    %v884 = vadd.f32 %v752, %v872
    %v885 = vadd.f32 %v757, %v877
    %v886 = vadd.f32 %v760, %v880
    %v887 = vld [vmem:[%s8] sm:$0x1]
    %v889 = vlaneseq
    %v890 = vshrl.u32 %v889, 7
    %v891 = vsub.s32 0, %v890
    %v892 = vrot.slane %v887, %v891
    %v894 = vmul.f32 %v883, %v892
    %v895 = vmul.f32 %v884, %v892
    %v896 = vmul.f32 %v885, %v892
    %v897 = vmul.f32 %v886, %v892
    %v898 = vld [vmem:[%s9] sm:$0x1]
    %v900 = vlaneseq
    %v901 = vshrl.u32 %v900, 7
    %v902 = vsub.s32 0, %v901
    %v903 = vrot.slane %v898, %v902
    %v905 = vadd.f32 %v894, %v903
    %v906 = vadd.f32 %v895, %v903
    %v907 = vadd.f32 %v896, %v903
    %v908 = vadd.f32 %v897, %v903
    %v909 = vadd.f32 %v905, %v86
    %v910 = vadd.f32 %v906, %v87
    %v911 = vadd.f32 %v907, %v88
    %v912 = vadd.f32 %v908, %v89
    %913 = vst [vmem:[#allocation9] sm:$0xff] %v909
    %914 = vst [vmem:[#allocation9 + $0x8] sm:$0xff] %v910
    %915 = vst [vmem:[#allocation9 + $0x10] sm:$0xff] %v911
    %916 = vst [vmem:[#allocation9 + $0x18] sm:$0xff] %v912
    // Predicated region
    $region58: #{tpu_custom_call.1} parent=1 // pred_check
      _
    $region59: #{tpu_custom_call.1} parent=1 // pred_check_branch
      %918 = sbr.rel (0) target = $region61
    $region60: #{tpu_custom_call.1} parent=1 // pred_region
      %s920 = ssub.s32 512, 512
      %921 = vsyncadd [#allocation5], %s920
      %s922 = sshll.u32 [#allocation9], 4
      %s923 = int_to_ptr.vmem [resolvable:$true] %s922
      %928 = dma.vmem_to_hbm [thread:$0]  %s923, 512, %s10, [#allocation5], 128, 128, 8
    $region61: #{tpu_custom_call.1} parent=1 // pred_fallthru
      _
    // Predicated region
    $region62: #{tpu_custom_call.1} parent=1 // pred_check
      _
    $region63: #{tpu_custom_call.1} parent=1 // pred_check_branch
      %930 = sbr.rel (0) target = $region65
    $region64: #{tpu_custom_call.1} parent=1 // pred_region
      %931 = dma.done [#allocation5], 512
    $region65: #{tpu_custom_call.1} parent=1 // pred_fallthru
      _
    %932 = vsyncpa [#allocation4], 1
    %933 = vsyncpa [#allocation7], 1
    %934 = vsyncpa [#allocation5], 1

</llo_original>
